<compile_context>
chip_gen: v7x
topology: tpu7x:2x2x1
jax: 0.10.0
libtpu: 0.0.40
codegen_flags: <defaults>
</compile_context>

<pallas_src>
import math

import jax
import jax.numpy as jnp
from jax.experimental import pallas as pl
from jax.experimental.pallas import tpu as pltpu

BN_EPS = 1e-5


# ---------------------------------------------------------------------------
# get_unit_sequence — identical logic to the PyTorch reference (plain Python).
# ---------------------------------------------------------------------------
def get_unit_sequence(input_dim, output_dim, n_hidden):
    reverse = False
    if input_dim > output_dim:
        reverse = True
        input_dim, output_dim = (output_dim, input_dim)
    diff = abs(output_dim.bit_length() - input_dim.bit_length())
    increment = diff // (n_hidden + 1)
    sequence = [input_dim] + [0] * n_hidden + [output_dim]
    for idx in range(n_hidden // 2):
        sequence[idx + 1] = 2 ** (sequence[idx].bit_length() + increment - 1)
        sequence[-2 - idx] = 2 ** ((sequence[-1 - idx] - 1).bit_length() - increment)
    if n_hidden % 2 == 1:
        sequence[n_hidden // 2 + 1] = (sequence[n_hidden // 2] + sequence[n_hidden // 2 + 2]) // 2
    if reverse:
        sequence.reverse()
    return sequence


def _round_up(v, m):
    return ((v + m - 1) // m) * m


def _vmem_budget_bytes():
    """~85% of the physical per-core VMEM (generation-aware: 128 MiB on
    v5e/v6e, 64 MiB on v7x).  Falls back to a conservative 64 MiB."""
    cap = None
    try:
        info = pltpu.get_tpu_info()
        for name in ("vmem_capacity_bytes", "vmem_bytes", "vmem_size_bytes"):
            cap = getattr(info, name, None)
            if cap:
                break
    except Exception:
        cap = None
    if not cap:
        cap = 64 * 1024 * 1024
    return int(cap * 0.85)


# ---------------------------------------------------------------------------
# Parameter construction (matches the PyTorch module's init).
# ---------------------------------------------------------------------------
def init_ffn_params(key, input_dim, output_dim, ffn_capacity):
    unit_sequence = get_unit_sequence(input_dim, output_dim, ffn_capacity)
    params = []
    for ind, n_units in enumerate(unit_sequence[:-1]):
        size_in, size_out = n_units, unit_sequence[ind + 1]
        key, kw, kb = jax.random.split(key, 3)
        # Xavier-uniform weight, stored as (in, out) = transpose of torch layout.
        limit = math.sqrt(6.0 / (size_in + size_out))
        w = jax.random.uniform(kw, (size_in, size_out), jnp.float32, -limit, limit)
        # nn.Linear default bias init (kept only for the reference; BN cancels it).
        blim = 1.0 / math.sqrt(size_in)
        b = jax.random.uniform(kb, (size_out,), jnp.float32, -blim, blim)
        gamma = jnp.ones((size_out,), jnp.float32)
        beta = jnp.zeros((size_out,), jnp.float32)
        params.append((w, b, gamma, beta))
    return params, unit_sequence


# ---------------------------------------------------------------------------
# RESIDENT plan: whole network in one grid step, exact per-layer padding.
# ---------------------------------------------------------------------------
def _pack_params_resident(params):
    """Per-layer exact padding (128 lanes); bf16 weights, f32 BN affine.
    Done ONCE at init — hoisted out of the forward pass."""
    packed = []
    for (w, _bias, gamma, beta) in params:
        ci, co = w.shape
        kp, npd = _round_up(ci, 128), _round_up(co, 128)
        wp = jnp.zeros((kp, npd), jnp.float32).at[:ci, :co].set(w).astype(jnp.bfloat16)
        gp = jnp.zeros((1, npd), jnp.float32).at[0, :co].set(gamma)
        bp = jnp.zeros((1, npd), jnp.float32).at[0, :co].set(beta)
        packed.append((wp, gp, bp))
    return packed


def _make_resident_kernel(dims, batch, bpad, eps):
    num_layers = len(dims) - 1
    inv_b = 1.0 / float(batch)
    need_mask = bpad != batch

    def kernel(*refs):
        x_ref = refs[0]
        o_ref = refs[1 + 3 * num_layers]
        if need_mask:
            row_mask = jax.lax.broadcasted_iota(jnp.int32, (bpad, 1), 0) < batch
        a = x_ref[...]                                     # (bpad, kpad0) f32
        for l in range(num_layers):
            w = refs[1 + 3 * l][...]                       # (kpad_l, npad_l) bf16
            gamma = refs[2 + 3 * l][...]                   # (1, npad_l) f32
            beta = refs[3 + 3 * l][...]
            # Linear (bias omitted: BN's mean subtraction cancels it exactly).
            y = jnp.dot(a.astype(jnp.bfloat16), w,
                        preferred_element_type=jnp.float32)
            # BatchNorm1d, training-mode batch stats (biased var), two-pass.
            mean = jnp.sum(y, axis=0, keepdims=True) * inv_b
            d = y - mean
            dv = jnp.where(row_mask, d, 0.0) if need_mask else d
            var = jnp.sum(dv * dv, axis=0, keepdims=True) * inv_b
            scale = gamma * jax.lax.rsqrt(var + eps)
            out = jnp.maximum(d * scale + beta, 0.0)       # BN affine + ReLU
            if need_mask:
                out = jnp.where(row_mask, out, 0.0)        # padded rows stay 0
            a = out
        o_ref[...] = a

    return kernel


def _build_resident_forward(dims, vmem_budget):
    num_layers = len(dims) - 1
    kpad0 = _round_up(dims[0], 128)
    npad_last = _round_up(dims[-1], 128)
    out_dim = dims[-1]
    in_dim0 = dims[0]

    def fwd(packed, x):
        batch, in_dim = x.shape
        assert in_dim == in_dim0
        bpad = _round_up(batch, 16)
        x_pad = jnp.zeros((bpad, kpad0), jnp.float32).at[:batch, :in_dim].set(x)

        flat = []
        for (w, g, b) in packed:
            flat.extend((w, g, b))

        flops = sum(2 * bpad * w.shape[0] * w.shape[1] for (w, _, _) in packed)
        bytes_accessed = (x_pad.size * 4 + bpad * npad_last * 4
                          + sum(int(w.size) * 2 + int(g.size) * 4 + int(b.size) * 4
                                for (w, g, b) in packed))
        cost = pl.CostEstimate(
            flops=int(flops),
            transcendentals=int(sum(int(g.size) for (_, g, _) in packed)),
            bytes_accessed=int(bytes_accessed))

        kernel = _make_resident_kernel(dims, batch, bpad, BN_EPS)
        out = pl.pallas_call(
            kernel,
            out_shape=jax.ShapeDtypeStruct((bpad, npad_last), jnp.float32),
            compiler_params=pltpu.CompilerParams(vmem_limit_bytes=vmem_budget),
            cost_estimate=cost,
        )(x_pad, *flat)
        return out[:batch, :out_dim]

    return fwd


# ---------------------------------------------------------------------------
# STREAMED plan: grid = (layer, out-col-tile); weights streamed tile-by-tile.
# ---------------------------------------------------------------------------
def _pack_params_streamed(params, dims):
    """Stacked (L, KMAX, NMAX) layout, KMAX/NMAX = max padded in/out dims.
    # TODO(synk): fully-ragged per-layer packing (scalar-prefetched offsets +
    # per-layer K) would cut streamed weight bytes further for uneven nets."""
    num_layers = len(params)
    kmax = _round_up(max(dims[:-1]), 128)
    nmax = _round_up(max(dims[1:]), 128)
    w_all = jnp.zeros((num_layers, kmax, nmax), jnp.float32)
    g_all = jnp.zeros((num_layers, 1, nmax), jnp.float32)
    b_all = jnp.zeros((num_layers, 1, nmax), jnp.float32)
    for l, (w, _bias, gamma, beta) in enumerate(params):
        ci, co = w.shape
        w_all = w_all.at[l, :ci, :co].set(w)
        g_all = g_all.at[l, 0, :co].set(gamma)
        b_all = b_all.at[l, 0, :co].set(beta)
    return (w_all.astype(jnp.bfloat16), g_all, b_all)


def _make_streamed_kernel(num_layers, batch, bpad, w_act, kmax, nmax, tn, eps):
    inv_b = 1.0 / float(batch)
    need_mask = bpad != batch

    def kernel(x_hbm, w_ref, g_ref, b_ref, o_ref, act_ref, dma_sem):
        l = pl.program_id(0)          # layer index (outer, sequential)
        j = pl.program_id(1)          # output-feature tile (inner)
        p = l % 2                     # ping-pong parity of the activation scratch

        # First step: stage the padded input straight HBM -> scratch slot 0
        # (no resident x block -> smaller fixed VMEM footprint, matters on v7x).
        @pl.when(jnp.logical_and(l == 0, j == 0))
        def _():
            if w_act > nmax:
                # Columns [nmax, w_act) of slot 1 are never written by the
                # chain; zero them once so later layers contract over zeros.
                act_ref[1] = jnp.zeros((bpad, w_act), act_ref.dtype)
            cp = pltpu.make_async_copy(x_hbm, act_ref.at[0], dma_sem)
            cp.start()
            cp.wait()

        col = pl.ds(pl.multiple_of(j * tn, tn), tn)

        a = act_ref[p]                       # (bpad, w_act) bf16 activations
        if w_act > kmax:
            a = a[:, :kmax]                  # static slice; padded cols are zero
        w = w_ref[0]                         # (kmax, tn) bf16 weight tile
        # Linear (bias omitted: BN's mean subtraction cancels it exactly).
        y = jnp.dot(a, w, preferred_element_type=jnp.float32)

        gamma = g_ref[l, :, col]             # (1, tn) resident BN affine
        beta = b_ref[l, :, col]

        # BatchNorm1d batch stats, two-pass (no E[x^2]-E[x]^2 cancellation).
        mean = jnp.sum(y, axis=0, keepdims=True) * inv_b
        d = y - mean
        if need_mask:
            rows = jax.lax.broadcasted_iota(jnp.int32, (bpad, tn), 0)
            mask = rows < batch
            dv = jnp.where(mask, d, 0.0)     # padded rows must not pollute var
        else:
            dv = d
        var = jnp.sum(dv * dv, axis=0, keepdims=True) * inv_b
        scale = gamma * jax.lax.rsqrt(var + eps)
        out = jnp.maximum(d * scale + beta, 0.0)            # BN + ReLU
        if need_mask:
            out = jnp.where(mask, out, 0.0)                  # padded rows stay 0

        @pl.when(l < num_layers - 1)         # skip dead work on the last layer
        def _():
            act_ref[1 - p, :, col] = out.astype(act_ref.dtype)

        @pl.when(l == num_layers - 1)
        def _():
            o_ref[:, col] = out              # resident output, flushed once

    return kernel


def _build_streamed_forward(dims, vmem_budget):
    num_layers = len(dims) - 1
    kmax = _round_up(max(dims[:-1]), 128)
    nmax = _round_up(max(dims[1:]), 128)
    w_act = max(kmax, nmax)
    out_dim = dims[-1]
    in_dim0 = dims[0]

    def fwd(packed, x):
        w_all, g_all, b_all = packed
        batch, in_dim = x.shape
        assert in_dim == in_dim0
        bpad = _round_up(batch, 16)

        x_pad = (jnp.zeros((bpad, w_act), jnp.float32)
                 .at[:batch, :in_dim].set(x).astype(jnp.bfloat16))

        # Resident bytes: f32 out block + bf16 ping-pong acts + BN affine.
        resident = bpad * nmax * 4 + 2 * bpad * w_act * 2 + 2 * num_layers * nmax * 4
        n_wbuf = 3
        tn = 128
        for cand in (nmax, 2048, 1024, 512, 256, 128):
            if (cand <= nmax and nmax % cand == 0 and cand % 128 == 0
                    and resident + n_wbuf * kmax * cand * 2 + (2 << 20) <= vmem_budget):
                tn = cand
                break
        n_tiles = nmax // tn

        w_idx = lambda li, ji: (li, 0, ji)
        w_spec = pl.BlockSpec((1, kmax, tn), w_idx)
        if num_layers * n_tiles > 8 and hasattr(pl, "Buffered"):
            try:
                # Deeper weight-tile pipelining hides DMA jitter when there are
                # many short steps; harmless to skip if unsupported.
                w_spec = pl.BlockSpec((1, kmax, tn), w_idx,
                                      pipeline_mode=pl.Buffered(3))
            except TypeError:
                w_spec = pl.BlockSpec((1, kmax, tn), w_idx)

        kernel = _make_streamed_kernel(num_layers, batch, bpad, w_act, kmax,
                                       nmax, tn, BN_EPS)

        cost = pl.CostEstimate(
            flops=int(2 * num_layers * bpad * kmax * nmax),
            transcendentals=int(num_layers * nmax),
            bytes_accessed=int(x_pad.size * 2 + w_all.size * 2
                               + g_all.size * 4 + b_all.size * 4 + bpad * nmax * 4),
        )

        out = pl.pallas_call(
            kernel,
            out_shape=jax.ShapeDtypeStruct((bpad, nmax), jnp.float32),
            grid_spec=pltpu.PrefetchScalarGridSpec(
                num_scalar_prefetch=0,
                grid=(num_layers, n_tiles),
                in_specs=[
                    pl.BlockSpec(memory_space=pl.ANY),                      # x (HBM)
                    w_spec,                                                 # W tile
                    pl.BlockSpec((num_layers, 1, nmax),
                                 lambda li, ji: (0, 0, 0)),                 # gamma (res.)
                    pl.BlockSpec((num_layers, 1, nmax),
                                 lambda li, ji: (0, 0, 0)),                 # beta (res.)
                ],
                out_specs=pl.BlockSpec((bpad, nmax), lambda li, ji: (0, 0)),  # resident
                scratch_shapes=[
                    pltpu.VMEM((2, bpad, w_act), jnp.bfloat16),   # ping-pong acts
                    pltpu.SemaphoreType.DMA(()),                  # x staging DMA
                ],
            ),
            compiler_params=pltpu.CompilerParams(
                # The layer chain + shared activation scratch is sequential.
                dimension_semantics=("arbitrary", "arbitrary"),
                vmem_limit_bytes=vmem_budget,
            ),
            cost_estimate=cost,
        )(x_pad, w_all, g_all, b_all)

        return out[:batch, :out_dim]

    return fwd


# ---------------------------------------------------------------------------
# PallasFFN: pack once at init, jitted fused forward.
# ---------------------------------------------------------------------------
class PallasFFN:
    def __init__(self, params, force_streamed=False):
        dims = [int(params[0][0].shape[0])] + [int(w.shape[1]) for (w, _, _, _) in params]
        self.dims = dims
        self.num_layers = len(params)
        self.vmem_budget = _vmem_budget_bytes()
        resident_bytes = sum(
            _round_up(dims[l], 128) * _round_up(dims[l + 1], 128) * 2   # bf16 W
            + 2 * _round_up(dims[l + 1], 128) * 4                       # gamma/beta
            for l in range(self.num_layers))
        # Leave at least half the VMEM budget for activations / temporaries.
        self.use_resident = (not force_streamed) and resident_bytes <= self.vmem_budget // 2
        if self.use_resident:
            self._packed = _pack_params_resident(params)
            fwd = _build_resident_forward(dims, self.vmem_budget)
        else:
            self._packed = _pack_params_streamed(params, dims)
            fwd = _build_streamed_forward(dims, self.vmem_budget)
        self._packed = jax.block_until_ready(self._packed)
        self._fwd = jax.jit(fwd)

    def __call__(self, x):
        return self._fwd(self._packed, x)


# ---------------------------------------------------------------------------
# Pure-JAX reference (keeps the Linear bias; mirrors the kernel matmul dtype).
# ---------------------------------------------------------------------------
def ffn_forward_ref(params, x):
    a = x
    for (w, b, gamma, beta) in params:
        y = jnp.dot(a.astype(jnp.bfloat16), w.astype(jnp.bfloat16),
                    preferred_element_type=jnp.float32)
        y = y + b  # nn.Linear bias — cancelled exactly by BN's mean subtraction
        mean = jnp.mean(y, axis=0, keepdims=True)
        var = jnp.mean((y - mean) ** 2, axis=0, keepdims=True)
        y = (y - mean) / jnp.sqrt(var + BN_EPS) * gamma + beta
        a = jnp.maximum(y, 0.0)
    return a


if __name__ == "__main__":
    # Module-consistent small shapes:
    #   input_dim=16, output_dim=64, hps={'ffn_capacity': 2, 'activation': ReLU}
    #   -> unit_sequence = [16, 16, 64, 64] -> layers 16->16, 16->64, 64->64
    batch = 8
    input_dim = 16
    output_dim = 64
    ffn_capacity = 2

    key = jax.random.PRNGKey(0)
    key, kx = jax.random.split(key)
    x = jax.random.normal(kx, (batch, input_dim), jnp.float32)

    params, unit_sequence = init_ffn_params(key, input_dim, output_dim, ffn_capacity)
    assert unit_sequence == [16, 16, 64, 64]

    ref = ffn_forward_ref(params, x)

    # Fast path: whole network resident in VMEM, single grid step.
    ffn_fast = PallasFFN(params)
    assert ffn_fast.use_resident
    out_fast = jax.block_until_ready(ffn_fast(x))
    assert out_fast.shape == (batch, output_dim)
    md = float(jnp.max(jnp.abs(out_fast - ref)))
    assert bool(jnp.allclose(out_fast, ref, atol=1e-3, rtol=1e-3)), \
        f"resident path max|diff|={md}"

    # Streamed fallback path (forced, so both code paths are verified on TPU).
    ffn_streamed = PallasFFN(params, force_streamed=True)
    assert not ffn_streamed.use_resident
    out_streamed = jax.block_until_ready(ffn_streamed(x))
    assert out_streamed.shape == (batch, output_dim)
    md2 = float(jnp.max(jnp.abs(out_streamed - ref)))
    assert bool(jnp.allclose(out_streamed, ref, atol=1e-3, rtol=1e-3)), \
        f"streamed path max|diff|={md2}"

    print("KERNEL_OK")
</pallas_src>

<mosaic_0001>
module attributes {stable_mosaic.version = 11 : i64} {
  func.func @kernel(%arg0: memref<16x128xf32, #tpu.memory_space<vmem>>, %arg1: memref<128x128xbf16, #tpu.memory_space<vmem>>, %arg2: memref<1x128xf32, #tpu.memory_space<vmem>>, %arg3: memref<1x128xf32, #tpu.memory_space<vmem>>, %arg4: memref<128x128xbf16, #tpu.memory_space<vmem>>, %arg5: memref<1x128xf32, #tpu.memory_space<vmem>>, %arg6: memref<1x128xf32, #tpu.memory_space<vmem>>, %arg7: memref<128x128xbf16, #tpu.memory_space<vmem>>, %arg8: memref<1x128xf32, #tpu.memory_space<vmem>>, %arg9: memref<1x128xf32, #tpu.memory_space<vmem>>, %arg10: memref<16x128xf32, #tpu.memory_space<vmem>>) attributes {dimension_semantics = [], scalar_prefetch = 0 : i64, scratch_operands = 0 : i64, tpu.core_type = #tpu.core_type<tc>} {
    %0 = tpu.iota {dimensions = array<i32: 0>} : vector<16x1xi32>
    %c8_i32 = arith.constant 8 : i32
    %1 = vector.broadcast %c8_i32 : i32 to vector<16x1xi32>
    %2 = arith.cmpi slt, %0, %1 : vector<16x1xi32>
    %c0 = arith.constant 0 : index
    %c0_0 = arith.constant 0 : index
    %3 = vector.load %arg0[%c0, %c0_0] : memref<16x128xf32, #tpu.memory_space<vmem>>, vector<16x128xf32>
    %c0_1 = arith.constant 0 : index
    %c0_2 = arith.constant 0 : index
    %4 = vector.load %arg1[%c0_1, %c0_2] : memref<128x128xbf16, #tpu.memory_space<vmem>>, vector<128x128xbf16>
    %c0_3 = arith.constant 0 : index
    %c0_4 = arith.constant 0 : index
    %5 = vector.load %arg2[%c0_3, %c0_4] : memref<1x128xf32, #tpu.memory_space<vmem>>, vector<1x128xf32>
    %c0_5 = arith.constant 0 : index
    %c0_6 = arith.constant 0 : index
    %6 = vector.load %arg3[%c0_5, %c0_6] : memref<1x128xf32, #tpu.memory_space<vmem>>, vector<1x128xf32>
    %7 = arith.truncf %3 : vector<16x128xf32> to vector<16x128xbf16>
    %cst = arith.constant dense<0.000000e+00> : vector<16x128xf32>
    %8 = tpu.matmul %7, %4, %cst {dimension_numbers = #tpu.dot_dimension_numbers<[1], [0], [0], [1], [0, 0, 1, 1], [], []>} : vector<16x128xbf16>, vector<128x128xbf16>, vector<16x128xf32> -> vector<16x128xf32>
    %cst_7 = arith.constant dense<0.000000e+00> : vector<128xf32>
    %9 = vector.multi_reduction <add>, %8, %cst_7 [0] : vector<16x128xf32> to vector<128xf32>
    %10 = vector.shape_cast %9 : vector<128xf32> to vector<1x128xf32>
    %cst_8 = arith.constant 1.250000e-01 : f32
    %11 = vector.broadcast %cst_8 : f32 to vector<1x128xf32>
    %12 = arith.mulf %10, %11 : vector<1x128xf32>
    %13 = vector.broadcast %12 : vector<1x128xf32> to vector<16x128xf32>
    %14 = arith.subf %8, %13 : vector<16x128xf32>
    %cst_9 = arith.constant 0.000000e+00 : f32
    %15 = vector.shape_cast %2 : vector<16x1xi1> to vector<16x1xi1>
    %16 = vector.broadcast %15 : vector<16x1xi1> to vector<16x128xi1>
    %17 = vector.broadcast %cst_9 : f32 to vector<16x128xf32>
    %18 = arith.select %16, %14, %17 : vector<16x128xi1>, vector<16x128xf32>
    %19 = arith.mulf %18, %18 : vector<16x128xf32>
    %cst_10 = arith.constant dense<0.000000e+00> : vector<128xf32>
    %20 = vector.multi_reduction <add>, %19, %cst_10 [0] : vector<16x128xf32> to vector<128xf32>
    %21 = vector.shape_cast %20 : vector<128xf32> to vector<1x128xf32>
    %cst_11 = arith.constant 1.250000e-01 : f32
    %22 = vector.broadcast %cst_11 : f32 to vector<1x128xf32>
    %23 = arith.mulf %21, %22 : vector<1x128xf32>
    %cst_12 = arith.constant 9.99999974E-6 : f32
    %24 = vector.broadcast %cst_12 : f32 to vector<1x128xf32>
    %25 = arith.addf %23, %24 : vector<1x128xf32>
    %26 = math.rsqrt %25 : vector<1x128xf32>
    %27 = arith.mulf %5, %26 : vector<1x128xf32>
    %28 = vector.broadcast %27 : vector<1x128xf32> to vector<16x128xf32>
    %29 = arith.mulf %14, %28 : vector<16x128xf32>
    %30 = vector.broadcast %6 : vector<1x128xf32> to vector<16x128xf32>
    %31 = arith.addf %29, %30 : vector<16x128xf32>
    %cst_13 = arith.constant 0.000000e+00 : f32
    %32 = vector.broadcast %cst_13 : f32 to vector<16x128xf32>
    %33 = arith.maximumf %31, %32 : vector<16x128xf32>
    %cst_14 = arith.constant 0.000000e+00 : f32
    %34 = vector.shape_cast %2 : vector<16x1xi1> to vector<16x1xi1>
    %35 = vector.broadcast %34 : vector<16x1xi1> to vector<16x128xi1>
    %36 = vector.broadcast %cst_14 : f32 to vector<16x128xf32>
    %37 = arith.select %35, %33, %36 : vector<16x128xi1>, vector<16x128xf32>
    %c0_15 = arith.constant 0 : index
    %c0_16 = arith.constant 0 : index
    %38 = vector.load %arg4[%c0_15, %c0_16] : memref<128x128xbf16, #tpu.memory_space<vmem>>, vector<128x128xbf16>
    %c0_17 = arith.constant 0 : index
    %c0_18 = arith.constant 0 : index
    %39 = vector.load %arg5[%c0_17, %c0_18] : memref<1x128xf32, #tpu.memory_space<vmem>>, vector<1x128xf32>
    %c0_19 = arith.constant 0 : index
    %c0_20 = arith.constant 0 : index
    %40 = vector.load %arg6[%c0_19, %c0_20] : memref<1x128xf32, #tpu.memory_space<vmem>>, vector<1x128xf32>
    %41 = arith.truncf %37 : vector<16x128xf32> to vector<16x128xbf16>
    %cst_21 = arith.constant dense<0.000000e+00> : vector<16x128xf32>
    %42 = tpu.matmul %41, %38, %cst_21 {dimension_numbers = #tpu.dot_dimension_numbers<[1], [0], [0], [1], [0, 0, 1, 1], [], []>} : vector<16x128xbf16>, vector<128x128xbf16>, vector<16x128xf32> -> vector<16x128xf32>
    %cst_22 = arith.constant dense<0.000000e+00> : vector<128xf32>
    %43 = vector.multi_reduction <add>, %42, %cst_22 [0] : vector<16x128xf32> to vector<128xf32>
    %44 = vector.shape_cast %43 : vector<128xf32> to vector<1x128xf32>
    %cst_23 = arith.constant 1.250000e-01 : f32
    %45 = vector.broadcast %cst_23 : f32 to vector<1x128xf32>
    %46 = arith.mulf %44, %45 : vector<1x128xf32>
    %47 = vector.broadcast %46 : vector<1x128xf32> to vector<16x128xf32>
    %48 = arith.subf %42, %47 : vector<16x128xf32>
    %cst_24 = arith.constant 0.000000e+00 : f32
    %49 = vector.shape_cast %2 : vector<16x1xi1> to vector<16x1xi1>
    %50 = vector.broadcast %49 : vector<16x1xi1> to vector<16x128xi1>
    %51 = vector.broadcast %cst_24 : f32 to vector<16x128xf32>
    %52 = arith.select %50, %48, %51 : vector<16x128xi1>, vector<16x128xf32>
    %53 = arith.mulf %52, %52 : vector<16x128xf32>
    %cst_25 = arith.constant dense<0.000000e+00> : vector<128xf32>
    %54 = vector.multi_reduction <add>, %53, %cst_25 [0] : vector<16x128xf32> to vector<128xf32>
    %55 = vector.shape_cast %54 : vector<128xf32> to vector<1x128xf32>
    %cst_26 = arith.constant 1.250000e-01 : f32
    %56 = vector.broadcast %cst_26 : f32 to vector<1x128xf32>
    %57 = arith.mulf %55, %56 : vector<1x128xf32>
    %cst_27 = arith.constant 9.99999974E-6 : f32
    %58 = vector.broadcast %cst_27 : f32 to vector<1x128xf32>
    %59 = arith.addf %57, %58 : vector<1x128xf32>
    %60 = math.rsqrt %59 : vector<1x128xf32>
    %61 = arith.mulf %39, %60 : vector<1x128xf32>
    %62 = vector.broadcast %61 : vector<1x128xf32> to vector<16x128xf32>
    %63 = arith.mulf %48, %62 : vector<16x128xf32>
    %64 = vector.broadcast %40 : vector<1x128xf32> to vector<16x128xf32>
    %65 = arith.addf %63, %64 : vector<16x128xf32>
    %cst_28 = arith.constant 0.000000e+00 : f32
    %66 = vector.broadcast %cst_28 : f32 to vector<16x128xf32>
    %67 = arith.maximumf %65, %66 : vector<16x128xf32>
    %cst_29 = arith.constant 0.000000e+00 : f32
    %68 = vector.shape_cast %2 : vector<16x1xi1> to vector<16x1xi1>
    %69 = vector.broadcast %68 : vector<16x1xi1> to vector<16x128xi1>
    %70 = vector.broadcast %cst_29 : f32 to vector<16x128xf32>
    %71 = arith.select %69, %67, %70 : vector<16x128xi1>, vector<16x128xf32>
    %c0_30 = arith.constant 0 : index
    %c0_31 = arith.constant 0 : index
    %72 = vector.load %arg7[%c0_30, %c0_31] : memref<128x128xbf16, #tpu.memory_space<vmem>>, vector<128x128xbf16>
    %c0_32 = arith.constant 0 : index
    %c0_33 = arith.constant 0 : index
    %73 = vector.load %arg8[%c0_32, %c0_33] : memref<1x128xf32, #tpu.memory_space<vmem>>, vector<1x128xf32>
    %c0_34 = arith.constant 0 : index
    %c0_35 = arith.constant 0 : index
    %74 = vector.load %arg9[%c0_34, %c0_35] : memref<1x128xf32, #tpu.memory_space<vmem>>, vector<1x128xf32>
    %75 = arith.truncf %71 : vector<16x128xf32> to vector<16x128xbf16>
    %cst_36 = arith.constant dense<0.000000e+00> : vector<16x128xf32>
    %76 = tpu.matmul %75, %72, %cst_36 {dimension_numbers = #tpu.dot_dimension_numbers<[1], [0], [0], [1], [0, 0, 1, 1], [], []>} : vector<16x128xbf16>, vector<128x128xbf16>, vector<16x128xf32> -> vector<16x128xf32>
    %cst_37 = arith.constant dense<0.000000e+00> : vector<128xf32>
    %77 = vector.multi_reduction <add>, %76, %cst_37 [0] : vector<16x128xf32> to vector<128xf32>
    %78 = vector.shape_cast %77 : vector<128xf32> to vector<1x128xf32>
    %cst_38 = arith.constant 1.250000e-01 : f32
    %79 = vector.broadcast %cst_38 : f32 to vector<1x128xf32>
    %80 = arith.mulf %78, %79 : vector<1x128xf32>
    %81 = vector.broadcast %80 : vector<1x128xf32> to vector<16x128xf32>
    %82 = arith.subf %76, %81 : vector<16x128xf32>
    %cst_39 = arith.constant 0.000000e+00 : f32
    %83 = vector.shape_cast %2 : vector<16x1xi1> to vector<16x1xi1>
    %84 = vector.broadcast %83 : vector<16x1xi1> to vector<16x128xi1>
    %85 = vector.broadcast %cst_39 : f32 to vector<16x128xf32>
    %86 = arith.select %84, %82, %85 : vector<16x128xi1>, vector<16x128xf32>
    %87 = arith.mulf %86, %86 : vector<16x128xf32>
    %cst_40 = arith.constant dense<0.000000e+00> : vector<128xf32>
    %88 = vector.multi_reduction <add>, %87, %cst_40 [0] : vector<16x128xf32> to vector<128xf32>
    %89 = vector.shape_cast %88 : vector<128xf32> to vector<1x128xf32>
    %cst_41 = arith.constant 1.250000e-01 : f32
    %90 = vector.broadcast %cst_41 : f32 to vector<1x128xf32>
    %91 = arith.mulf %89, %90 : vector<1x128xf32>
    %cst_42 = arith.constant 9.99999974E-6 : f32
    %92 = vector.broadcast %cst_42 : f32 to vector<1x128xf32>
    %93 = arith.addf %91, %92 : vector<1x128xf32>
    %94 = math.rsqrt %93 : vector<1x128xf32>
    %95 = arith.mulf %73, %94 : vector<1x128xf32>
    %96 = vector.broadcast %95 : vector<1x128xf32> to vector<16x128xf32>
    %97 = arith.mulf %82, %96 : vector<16x128xf32>
    %98 = vector.broadcast %74 : vector<1x128xf32> to vector<16x128xf32>
    %99 = arith.addf %97, %98 : vector<16x128xf32>
    %cst_43 = arith.constant 0.000000e+00 : f32
    %100 = vector.broadcast %cst_43 : f32 to vector<16x128xf32>
    %101 = arith.maximumf %99, %100 : vector<16x128xf32>
    %cst_44 = arith.constant 0.000000e+00 : f32
    %102 = vector.shape_cast %2 : vector<16x1xi1> to vector<16x1xi1>
    %103 = vector.broadcast %102 : vector<16x1xi1> to vector<16x128xi1>
    %104 = vector.broadcast %cst_44 : f32 to vector<16x128xf32>
    %105 = arith.select %103, %101, %104 : vector<16x128xi1>, vector<16x128xf32>
    %c0_45 = arith.constant 0 : index
    %c0_46 = arith.constant 0 : index
    %106 = vector.load %arg10[%c0_45, %c0_46] : memref<16x128xf32, #tpu.memory_space<vmem>>, vector<16x128xf32>
    tpu.vector_store %arg10[%c0_45, %c0_46], %105 {strides = array<i32>} : memref<16x128xf32, #tpu.memory_space<vmem>>, vector<16x128xf32>,
    return
  }
}

</mosaic_0001>

<llo_original>
// kernel: fwd.1
$region0: #{fwd.1}
  #allocation0 [shape = 'u32[]', space=smem, size = 0x4, offset = 0x4, fixed_abs, tag = 'smem constant byte address 0x4 - core index']
  #allocation1 [shape = 'u32[144,128]{1,0:T(1,128)}', space=vmem, size = 0x12000, scoped, tag = 'internal scratch']
  %s0 = inlined_call_operand.vmem [shape: f32[16,128], index: 0, kind: input, shape index: {}]
  %s1 = inlined_call_operand.hbm [shape: bf16[128,128], index: 1, kind: input, shape index: {}]
  %s2 = inlined_call_operand.vmem [shape: f32[1,128], index: 2, kind: input, shape index: {}]
  %s3 = inlined_call_operand.vmem [shape: f32[1,128], index: 3, kind: input, shape index: {}]
  %s4 = inlined_call_operand.hbm [shape: bf16[128,128], index: 4, kind: input, shape index: {}]
  %s5 = inlined_call_operand.vmem [shape: f32[1,128], index: 5, kind: input, shape index: {}]
  %s6 = inlined_call_operand.vmem [shape: f32[1,128], index: 6, kind: input, shape index: {}]
  %s7 = inlined_call_operand.hbm [shape: bf16[128,128], index: 7, kind: input, shape index: {}]
  %s8 = inlined_call_operand.vmem [shape: f32[1,128], index: 8, kind: input, shape index: {}]
  %s9 = inlined_call_operand.vmem [shape: f32[1,128], index: 9, kind: input, shape index: {}]
  %s10 = inlined_call_operand.vmem [shape: f32[16,128], index: 10, kind: output, shape index: {}]
  %s11 = sld [smem:[#allocation0]]
  $region62: #{fwd.1} parent=0
    _
  %s13 = ssub.s32 1, %s11
  %s14 = scalar_select 0, %s13, %s11
  $region1: #{fwd.1} parent=0
    #allocation2 [shape = 'u8[32768]{0}', space=vmem, size = 0x8000, scoped, tag = 'input window, operand 1, single buffered']
    #allocation3 [shape = 's32[1]{0}', space=sflag, size = 0x4, scoped, tag = 'scoped memory for fwd.1']
    #allocation4 [shape = 'u8[32768]{0}', space=vmem, size = 0x8000, scoped, tag = 'input window, operand 4, single buffered']
    #allocation5 [shape = 's32[1]{0}', space=sflag, size = 0x4, scoped, tag = 'scoped memory for fwd.1']
    #allocation6 [shape = 'u8[32768]{0}', space=vmem, size = 0x8000, scoped, tag = 'input window, operand 7, single buffered']
    %15 = vsyncpa [#allocation3], 0
    %16 = vsyncpa [#allocation5], 0
    // Predicated region
    $region2: #{fwd.1} parent=1 // pred_check
      _
    $region3: #{fwd.1} parent=1 // pred_check_branch
      %18 = sbr.rel (0) target = $region5
    $region4: #{fwd.1} parent=1 // pred_region
      _
    $region5: #{fwd.1} parent=1 // pred_fallthru
      _
    // Predicated region
    $region6: #{fwd.1} parent=1 // pred_check
      _
    $region7: #{fwd.1} parent=1 // pred_check_branch
      %20 = sbr.rel (0) target = $region9
    $region8: #{fwd.1} parent=1 // pred_region
      %s22 = ssub.s32 1024, 1024
      %23 = vsyncadd [#allocation3], %s22
      %s24 = sshll.u32 [#allocation2], 4
      %s25 = int_to_ptr.vmem [resolvable:$true] %s24
      %30 = dma.hbm_to_vmem [thread:$0]  %s1, 1024, %s25, [#allocation3], 64, 64, 4
    $region9: #{fwd.1} parent=1 // pred_fallthru
      _
    // Predicated region
    $region10: #{fwd.1} parent=1 // pred_check
      _
    $region11: #{fwd.1} parent=1 // pred_check_branch
      %32 = sbr.rel (0) target = $region13
    $region12: #{fwd.1} parent=1 // pred_region
      _
    $region13: #{fwd.1} parent=1 // pred_fallthru
      _
    // Predicated region
    $region14: #{fwd.1} parent=1 // pred_check
      _
    $region15: #{fwd.1} parent=1 // pred_check_branch
      %34 = sbr.rel (0) target = $region17
    $region16: #{fwd.1} parent=1 // pred_region
      _
    $region17: #{fwd.1} parent=1 // pred_fallthru
      _
    // Predicated region
    $region18: #{fwd.1} parent=1 // pred_check
      _
    $region19: #{fwd.1} parent=1 // pred_check_branch
      %36 = sbr.rel (0) target = $region21
    $region20: #{fwd.1} parent=1 // pred_region
      %s38 = ssub.s32 1024, 1024
      %39 = vsyncadd [#allocation5], %s38
      %s40 = sshll.u32 [#allocation4], 4
      %s41 = int_to_ptr.vmem [resolvable:$true] %s40
      %46 = dma.hbm_to_vmem [thread:$0]  %s4, 1024, %s41, [#allocation5], 64, 64, 4
    $region21: #{fwd.1} parent=1 // pred_fallthru
      _
    // Predicated region
    $region22: #{fwd.1} parent=1 // pred_check
      _
    $region23: #{fwd.1} parent=1 // pred_check_branch
      %48 = sbr.rel (0) target = $region25
    $region24: #{fwd.1} parent=1 // pred_region
      _
    $region25: #{fwd.1} parent=1 // pred_fallthru
      _
    // Predicated region
    $region26: #{fwd.1} parent=1 // pred_check
      _
    $region27: #{fwd.1} parent=1 // pred_check_branch
      %50 = sbr.rel (0) target = $region29
    $region28: #{fwd.1} parent=1 // pred_region
      _
    $region29: #{fwd.1} parent=1 // pred_fallthru
      _
    // Predicated region
    $region30: #{fwd.1} parent=1 // pred_check
      _
    $region31: #{fwd.1} parent=1 // pred_check_branch
      %52 = sbr.rel (0) target = $region33
    $region32: #{fwd.1} parent=1 // pred_region
      %s54 = ssub.s32 1024, 1024
      %55 = vsyncadd [#allocation5], %s54
      %s56 = sshll.u32 [#allocation6], 4
      %s57 = int_to_ptr.vmem [resolvable:$true] %s56
      %62 = dma.hbm_to_vmem [thread:$0]  %s7, 1024, %s57, [#allocation5], 64, 64, 4
    $region33: #{fwd.1} parent=1 // pred_fallthru
      _
    // Predicated region
    $region34: #{fwd.1} parent=1 // pred_check
      _
    $region35: #{fwd.1} parent=1 // pred_check_branch
      %64 = sbr.rel (0) target = $region37
    $region36: #{fwd.1} parent=1 // pred_region
      _
    $region37: #{fwd.1} parent=1 // pred_fallthru
      _
    // Predicated region
    $region38: #{fwd.1} parent=1 // pred_check
      _
    $region39: #{fwd.1} parent=1 // pred_check_branch
      %66 = sbr.rel (0) target = $region41
    $region40: #{fwd.1} parent=1 // pred_region
      _
    $region41: #{fwd.1} parent=1 // pred_fallthru
      _
    // Predicated region
    $region42: #{fwd.1} parent=1 // pred_check
      _
    $region43: #{fwd.1} parent=1 // pred_check_branch
      %68 = sbr.rel (0) target = $region45
    $region44: #{fwd.1} parent=1 // pred_region
      %69 = dma.done [#allocation3], 1024
    $region45: #{fwd.1} parent=1 // pred_fallthru
      _
    // Predicated region
    $region46: #{fwd.1} parent=1 // pred_check
      _
    $region47: #{fwd.1} parent=1 // pred_check_branch
      %71 = sbr.rel (0) target = $region49
    $region48: #{fwd.1} parent=1 // pred_region
      %72 = dma.done [#allocation5], 1024
    $region49: #{fwd.1} parent=1 // pred_fallthru
      _
    // Predicated region
    $region50: #{fwd.1} parent=1 // pred_check
      _
    $region51: #{fwd.1} parent=1 // pred_check_branch
      %74 = sbr.rel (0) target = $region53
    $region52: #{fwd.1} parent=1 // pred_region
      %75 = dma.done [#allocation5], 1024
    $region53: #{fwd.1} parent=1 // pred_fallthru
      _
    %v77 = vlaneseq
    %v78 = vshrl.u32 %v77, 7
    %v79 = vadd.s32 %v78, 8
    %vm80 = vcmp.lt.s32.totalorder %v78, 8
    %vm81 = vcmp.lt.s32.totalorder %v79, 8
    %v82 = vld [vmem:[%s0] sm:$0xff]
    %v83 = vld [vmem:[%s0 + $0x8] sm:$0xff]
    %v84 = vld [vmem:[#allocation2] sm:$0xf]
    %v85 = vld [vmem:[#allocation2 + $0x4] sm:$0xf]
    %v86 = vld [vmem:[#allocation2 + $0x8] sm:$0xf]
    %v87 = vld [vmem:[#allocation2 + $0xc] sm:$0xf]
    %v88 = vld [vmem:[#allocation2 + $0x10] sm:$0xf]
    %v89 = vld [vmem:[#allocation2 + $0x14] sm:$0xf]
    %v90 = vld [vmem:[#allocation2 + $0x18] sm:$0xf]
    %v91 = vld [vmem:[#allocation2 + $0x1c] sm:$0xf]
    %v92 = vld [vmem:[#allocation2 + $0x20] sm:$0xf]
    %v93 = vld [vmem:[#allocation2 + $0x24] sm:$0xf]
    %v94 = vld [vmem:[#allocation2 + $0x28] sm:$0xf]
    %v95 = vld [vmem:[#allocation2 + $0x2c] sm:$0xf]
    %v96 = vld [vmem:[#allocation2 + $0x30] sm:$0xf]
    %v97 = vld [vmem:[#allocation2 + $0x34] sm:$0xf]
    %v98 = vld [vmem:[#allocation2 + $0x38] sm:$0xf]
    %v99 = vld [vmem:[#allocation2 + $0x3c] sm:$0xf]
    %v100 = vld [vmem:[%s2] sm:$0x1]
    %v101 = vld [vmem:[%s3] sm:$0x1]
    %v102 = vpack.c.bf16 %v83, %v82
    %v119 = vunpack.c.l.b16 %v84
    %v120 = vunpack.c.l.b16 %v85
    %v121 = vunpack.c.l.b16 %v86
    %v122 = vunpack.c.l.b16 %v87
    %v123 = vunpack.c.l.b16 %v88
    %v124 = vunpack.c.l.b16 %v89
    %v125 = vunpack.c.l.b16 %v90
    %v126 = vunpack.c.l.b16 %v91
    %v127 = vunpack.c.l.b16 %v92
    %v128 = vunpack.c.l.b16 %v93
    %v129 = vunpack.c.l.b16 %v94
    %v130 = vunpack.c.l.b16 %v95
    %v131 = vunpack.c.l.b16 %v96
    %v132 = vunpack.c.l.b16 %v97
    %v133 = vunpack.c.l.b16 %v98
    %v134 = vunpack.c.l.b16 %v99
    %v135 = vpack.c.b16 %v120, %v119
    %v136 = vpack.c.b16 %v122, %v121
    %v137 = vpack.c.b16 %v124, %v123
    %v138 = vpack.c.b16 %v126, %v125
    %v139 = vpack.c.b16 %v128, %v127
    %v140 = vpack.c.b16 %v130, %v129
    %v141 = vpack.c.b16 %v132, %v131
    %v142 = vpack.c.b16 %v134, %v133
    %151 = vmatprep.subr.bf16.mxu0 0
    %152 = vmatpush1.bf16.msra.mxu0 %v135
    %153 = vmatprep.subr.bf16.mxu0 0
    %154 = vmatpush1.bf16.msra.mxu0 %v136
    %155 = vmatprep.subr.bf16.mxu0 0
    %156 = vmatpush1.bf16.msra.mxu0 %v137
    %157 = vmatprep.subr.bf16.mxu0 0
    %158 = vmatpush1.bf16.msra.mxu0 %v138
    %159 = vmatprep.subr.bf16.mxu0 0
    %160 = vmatpush1.bf16.msra.mxu0 %v139
    %161 = vmatprep.subr.bf16.mxu0 0
    %162 = vmatpush1.bf16.msra.mxu0 %v140
    %163 = vmatprep.subr.bf16.mxu0 0
    %164 = vmatpush1.bf16.msra.mxu0 %v141
    %165 = vmatprep.subr.bf16.mxu0 0
    %166 = vmatpush1.bf16.msra.mxu0 %v142
    %167 = vmatprep.subr.bf16.mxu0 0
    %168 = vmatpush1.bf16.msra.mxu0 0
    %169 = vmatprep.subr.bf16.mxu0 0
    %170 = vmatpush1.bf16.msra.mxu0 0
    %171 = vmatprep.subr.bf16.mxu0 0
    %172 = vmatpush1.bf16.msra.mxu0 0
    %173 = vmatprep.subr.bf16.mxu0 0
    %174 = vmatpush1.bf16.msra.mxu0 0
    %175 = vmatprep.subr.bf16.mxu0 0
    %176 = vmatpush1.bf16.msra.mxu0 0
    %177 = vmatprep.subr.bf16.mxu0 0
    %178 = vmatpush1.bf16.msra.mxu0 0
    %179 = vmatprep.subr.bf16.mxu0 0
    %180 = vmatpush1.bf16.msra.mxu0 0
    %181 = vmatprep.subr.bf16.mxu0 0
    %182 = vmatpush1.bf16.msra.mxu0 0
    %183 = vmatprep.mubr.bf16.mxu0 0
    %184 = vmatmul.mubr.bf16.gmra.mrb[0].mxu0 %v102
    %v185 = vpop.f32.mrb[0].mxu0
    %v186 = vadd.f32 0.0, %v185
    %v187 = vpop.f32.mrb[0].mxu0
    %v188 = vpop.f32.mrb[0].mxu0
    %v189 = vadd.f32 0.0, %v188
    %v190 = vpop.f32.mrb[0].mxu0
    %191 = vdwg.mxu0
    %v192 = vadd.f32 %v186, %v189
    %v193 = vrot.slane %v192, 4
    %v194 = vadd.f32 %v192, %v193
    %v195 = vrot.slane %v194, 2
    %v196 = vadd.f32 %v194, %v195
    %v197 = vrot.slane %v196, 1
    %v198 = vadd.f32 %v196, %v197
    %v199 = vmul.f32 %v198, 0.125
    %v200 = vsub.f32 %v186, %v199
    %v201 = vsub.f32 %v189, %v199
    %v202 = vsel %vm80, 1, 0
    %v203 = vsel %vm81, 1, 0
    %vm204 = vcmp.eq.s32.totalorder %v202, 1
    %vm205 = vcmp.eq.s32.totalorder %v203, 1
    %v206 = vsel %vm204, %v200, 0.0
    %v207 = vsel %vm205, %v201, 0.0
    %v208 = vmul.f32 %v206, %v206
    %v209 = vmul.f32 %v207, %v207
    %v210 = vadd.f32 %v208, %v209
    %v211 = vrot.slane %v210, 4
    %v212 = vadd.f32 %v210, %v211
    %v213 = vrot.slane %v212, 2
    %v214 = vadd.f32 %v212, %v213
    %v215 = vrot.slane %v214, 1
    %v216 = vadd.f32 %v214, %v215
    %v217 = vmul.f32 %v216, 0.125
    %v218 = vadd.f32 %v217, 1e-05
    %v219 = vrsqrt.pop %v218
    %v220 = vmul.f32 %v100, %v219
    %v222 = vlaneseq
    %v223 = vshrl.u32 %v222, 7
    %v224 = vsub.s32 0, %v223
    %v225 = vrot.slane %v220, %v224
    %v227 = vmul.f32 %v200, %v225
    %v228 = vmul.f32 %v201, %v225
    %v230 = vlaneseq
    %v231 = vshrl.u32 %v230, 7
    %v232 = vsub.s32 0, %v231
    %v233 = vrot.slane %v101, %v232
    %v235 = vadd.f32 %v227, %v233
    %v236 = vadd.f32 %v228, %v233
    %v237 = vmax.f32 %v235, 0.0
    %v238 = vmax.f32 %v236, 0.0
    %v239 = vsel %vm204, %v237, 0.0
    %v240 = vsel %vm205, %v238, 0.0
    %v241 = vld [vmem:[#allocation4] sm:$0xf]
    %v242 = vld [vmem:[#allocation4 + $0x4] sm:$0xf]
    %v243 = vld [vmem:[#allocation4 + $0x8] sm:$0xf]
    %v244 = vld [vmem:[#allocation4 + $0xc] sm:$0xf]
    %v245 = vld [vmem:[#allocation4 + $0x10] sm:$0xf]
    %v246 = vld [vmem:[#allocation4 + $0x14] sm:$0xf]
    %v247 = vld [vmem:[#allocation4 + $0x18] sm:$0xf]
    %v248 = vld [vmem:[#allocation4 + $0x1c] sm:$0xf]
    %v249 = vld [vmem:[#allocation4 + $0x20] sm:$0xf]
    %v250 = vld [vmem:[#allocation4 + $0x24] sm:$0xf]
    %v251 = vld [vmem:[#allocation4 + $0x28] sm:$0xf]
    %v252 = vld [vmem:[#allocation4 + $0x2c] sm:$0xf]
    %v253 = vld [vmem:[#allocation4 + $0x30] sm:$0xf]
    %v254 = vld [vmem:[#allocation4 + $0x34] sm:$0xf]
    %v255 = vld [vmem:[#allocation4 + $0x38] sm:$0xf]
    %v256 = vld [vmem:[#allocation4 + $0x3c] sm:$0xf]
    %v257 = vld [vmem:[%s5] sm:$0x1]
    %v258 = vld [vmem:[%s6] sm:$0x1]
    %v259 = vpack.c.bf16 %v240, %v239
    %v276 = vunpack.c.l.b16 %v241
    %v277 = vunpack.c.l.b16 %v242
    %v278 = vunpack.c.l.b16 %v243
    %v279 = vunpack.c.l.b16 %v244
    %v280 = vunpack.c.l.b16 %v245
    %v281 = vunpack.c.l.b16 %v246
    %v282 = vunpack.c.l.b16 %v247
    %v283 = vunpack.c.l.b16 %v248
    %v284 = vunpack.c.l.b16 %v249
    %v285 = vunpack.c.l.b16 %v250
    %v286 = vunpack.c.l.b16 %v251
    %v287 = vunpack.c.l.b16 %v252
    %v288 = vunpack.c.l.b16 %v253
    %v289 = vunpack.c.l.b16 %v254
    %v290 = vunpack.c.l.b16 %v255
    %v291 = vunpack.c.l.b16 %v256
    %v292 = vpack.c.b16 %v277, %v276
    %v293 = vpack.c.b16 %v279, %v278
    %v294 = vpack.c.b16 %v281, %v280
    %v295 = vpack.c.b16 %v283, %v282
    %v296 = vpack.c.b16 %v285, %v284
    %v297 = vpack.c.b16 %v287, %v286
    %v298 = vpack.c.b16 %v289, %v288
    %v299 = vpack.c.b16 %v291, %v290
    %308 = vmatprep.subr.bf16.mxu0 0
    %309 = vmatpush1.bf16.msra.mxu0 %v292
    %310 = vmatprep.subr.bf16.mxu0 0
    %311 = vmatpush1.bf16.msra.mxu0 %v293
    %312 = vmatprep.subr.bf16.mxu0 0
    %313 = vmatpush1.bf16.msra.mxu0 %v294
    %314 = vmatprep.subr.bf16.mxu0 0
    %315 = vmatpush1.bf16.msra.mxu0 %v295
    %316 = vmatprep.subr.bf16.mxu0 0
    %317 = vmatpush1.bf16.msra.mxu0 %v296
    %318 = vmatprep.subr.bf16.mxu0 0
    %319 = vmatpush1.bf16.msra.mxu0 %v297
    %320 = vmatprep.subr.bf16.mxu0 0
    %321 = vmatpush1.bf16.msra.mxu0 %v298
    %322 = vmatprep.subr.bf16.mxu0 0
    %323 = vmatpush1.bf16.msra.mxu0 %v299
    %324 = vmatprep.subr.bf16.mxu0 0
    %325 = vmatpush1.bf16.msra.mxu0 0
    %326 = vmatprep.subr.bf16.mxu0 0
    %327 = vmatpush1.bf16.msra.mxu0 0
    %328 = vmatprep.subr.bf16.mxu0 0
    %329 = vmatpush1.bf16.msra.mxu0 0
    %330 = vmatprep.subr.bf16.mxu0 0
    %331 = vmatpush1.bf16.msra.mxu0 0
    %332 = vmatprep.subr.bf16.mxu0 0
    %333 = vmatpush1.bf16.msra.mxu0 0
    %334 = vmatprep.subr.bf16.mxu0 0
    %335 = vmatpush1.bf16.msra.mxu0 0
    %336 = vmatprep.subr.bf16.mxu0 0
    %337 = vmatpush1.bf16.msra.mxu0 0
    %338 = vmatprep.subr.bf16.mxu0 0
    %339 = vmatpush1.bf16.msra.mxu0 0
    %340 = vmatprep.mubr.bf16.mxu0 0
    %341 = vmatmul.mubr.bf16.gmra.mrb[0].mxu0 %v259
    %v342 = vpop.f32.mrb[0].mxu0
    %v343 = vadd.f32 0.0, %v342
    %v344 = vpop.f32.mrb[0].mxu0
    %v345 = vpop.f32.mrb[0].mxu0
    %v346 = vadd.f32 0.0, %v345
    %v347 = vpop.f32.mrb[0].mxu0
    %348 = vdwg.mxu0
    %v349 = vadd.f32 %v343, %v346
    %v350 = vrot.slane %v349, 4
    %v351 = vadd.f32 %v349, %v350
    %v352 = vrot.slane %v351, 2
    %v353 = vadd.f32 %v351, %v352
    %v354 = vrot.slane %v353, 1
    %v355 = vadd.f32 %v353, %v354
    %v356 = vmul.f32 %v355, 0.125
    %v357 = vsub.f32 %v343, %v356
    %v358 = vsub.f32 %v346, %v356
    %v359 = vsel %vm204, %v357, 0.0
    %v360 = vsel %vm205, %v358, 0.0
    %v361 = vmul.f32 %v359, %v359
    %v362 = vmul.f32 %v360, %v360
    %v363 = vadd.f32 %v361, %v362
    %v364 = vrot.slane %v363, 4
    %v365 = vadd.f32 %v363, %v364
    %v366 = vrot.slane %v365, 2
    %v367 = vadd.f32 %v365, %v366
    %v368 = vrot.slane %v367, 1
    %v369 = vadd.f32 %v367, %v368
    %v370 = vmul.f32 %v369, 0.125
    %v371 = vadd.f32 %v370, 1e-05
    %v372 = vrsqrt.pop %v371
    %v373 = vmul.f32 %v257, %v372
    %v375 = vlaneseq
    %v376 = vshrl.u32 %v375, 7
    %v377 = vsub.s32 0, %v376
    %v378 = vrot.slane %v373, %v377
    %v380 = vmul.f32 %v357, %v378
    %v381 = vmul.f32 %v358, %v378
    %v383 = vlaneseq
    %v384 = vshrl.u32 %v383, 7
    %v385 = vsub.s32 0, %v384
    %v386 = vrot.slane %v258, %v385
    %v388 = vadd.f32 %v380, %v386
    %v389 = vadd.f32 %v381, %v386
    %v390 = vmax.f32 %v388, 0.0
    %v391 = vmax.f32 %v389, 0.0
    %v392 = vsel %vm204, %v390, 0.0
    %v393 = vsel %vm205, %v391, 0.0
    %v394 = vld [vmem:[#allocation6] sm:$0xf]
    %v395 = vld [vmem:[#allocation6 + $0x4] sm:$0xf]
    %v396 = vld [vmem:[#allocation6 + $0x8] sm:$0xf]
    %v397 = vld [vmem:[#allocation6 + $0xc] sm:$0xf]
    %v398 = vld [vmem:[#allocation6 + $0x10] sm:$0xf]
    %v399 = vld [vmem:[#allocation6 + $0x14] sm:$0xf]
    %v400 = vld [vmem:[#allocation6 + $0x18] sm:$0xf]
    %v401 = vld [vmem:[#allocation6 + $0x1c] sm:$0xf]
    %v402 = vld [vmem:[#allocation6 + $0x20] sm:$0xf]
    %v403 = vld [vmem:[#allocation6 + $0x24] sm:$0xf]
    %v404 = vld [vmem:[#allocation6 + $0x28] sm:$0xf]
    %v405 = vld [vmem:[#allocation6 + $0x2c] sm:$0xf]
    %v406 = vld [vmem:[#allocation6 + $0x30] sm:$0xf]
    %v407 = vld [vmem:[#allocation6 + $0x34] sm:$0xf]
    %v408 = vld [vmem:[#allocation6 + $0x38] sm:$0xf]
    %v409 = vld [vmem:[#allocation6 + $0x3c] sm:$0xf]
    %v410 = vld [vmem:[%s8] sm:$0x1]
    %v411 = vld [vmem:[%s9] sm:$0x1]
    %v412 = vpack.c.bf16 %v393, %v392
    %v429 = vunpack.c.l.b16 %v394
    %v430 = vunpack.c.l.b16 %v395
    %v431 = vunpack.c.l.b16 %v396
    %v432 = vunpack.c.l.b16 %v397
    %v433 = vunpack.c.l.b16 %v398
    %v434 = vunpack.c.l.b16 %v399
    %v435 = vunpack.c.l.b16 %v400
    %v436 = vunpack.c.l.b16 %v401
    %v437 = vunpack.c.l.b16 %v402
    %v438 = vunpack.c.l.b16 %v403
    %v439 = vunpack.c.l.b16 %v404
    %v440 = vunpack.c.l.b16 %v405
    %v441 = vunpack.c.l.b16 %v406
    %v442 = vunpack.c.l.b16 %v407
    %v443 = vunpack.c.l.b16 %v408
    %v444 = vunpack.c.l.b16 %v409
    %v445 = vpack.c.b16 %v430, %v429
    %v446 = vpack.c.b16 %v432, %v431
    %v447 = vpack.c.b16 %v434, %v433
    %v448 = vpack.c.b16 %v436, %v435
    %v449 = vpack.c.b16 %v438, %v437
    %v450 = vpack.c.b16 %v440, %v439
    %v451 = vpack.c.b16 %v442, %v441
    %v452 = vpack.c.b16 %v444, %v443
    %461 = vmatprep.subr.bf16.mxu0 0
    %462 = vmatpush1.bf16.msra.mxu0 %v445
    %463 = vmatprep.subr.bf16.mxu0 0
    %464 = vmatpush1.bf16.msra.mxu0 %v446
    %465 = vmatprep.subr.bf16.mxu0 0
    %466 = vmatpush1.bf16.msra.mxu0 %v447
    %467 = vmatprep.subr.bf16.mxu0 0
    %468 = vmatpush1.bf16.msra.mxu0 %v448
    %469 = vmatprep.subr.bf16.mxu0 0
    %470 = vmatpush1.bf16.msra.mxu0 %v449
    %471 = vmatprep.subr.bf16.mxu0 0
    %472 = vmatpush1.bf16.msra.mxu0 %v450
    %473 = vmatprep.subr.bf16.mxu0 0
    %474 = vmatpush1.bf16.msra.mxu0 %v451
    %475 = vmatprep.subr.bf16.mxu0 0
    %476 = vmatpush1.bf16.msra.mxu0 %v452
    %477 = vmatprep.subr.bf16.mxu0 0
    %478 = vmatpush1.bf16.msra.mxu0 0
    %479 = vmatprep.subr.bf16.mxu0 0
    %480 = vmatpush1.bf16.msra.mxu0 0
    %481 = vmatprep.subr.bf16.mxu0 0
    %482 = vmatpush1.bf16.msra.mxu0 0
    %483 = vmatprep.subr.bf16.mxu0 0
    %484 = vmatpush1.bf16.msra.mxu0 0
    %485 = vmatprep.subr.bf16.mxu0 0
    %486 = vmatpush1.bf16.msra.mxu0 0
    %487 = vmatprep.subr.bf16.mxu0 0
    %488 = vmatpush1.bf16.msra.mxu0 0
    %489 = vmatprep.subr.bf16.mxu0 0
    %490 = vmatpush1.bf16.msra.mxu0 0
    %491 = vmatprep.subr.bf16.mxu0 0
    %492 = vmatpush1.bf16.msra.mxu0 0
    %493 = vmatprep.mubr.bf16.mxu0 0
    %494 = vmatmul.mubr.bf16.gmra.mrb[0].mxu0 %v412
    %v495 = vpop.f32.mrb[0].mxu0
    %v496 = vadd.f32 0.0, %v495
    %v497 = vpop.f32.mrb[0].mxu0
    %v498 = vpop.f32.mrb[0].mxu0
    %v499 = vadd.f32 0.0, %v498
    %v500 = vpop.f32.mrb[0].mxu0
    %501 = vdwg.mxu0
    %v502 = vadd.f32 %v496, %v499
    %v503 = vrot.slane %v502, 4
    %v504 = vadd.f32 %v502, %v503
    %v505 = vrot.slane %v504, 2
    %v506 = vadd.f32 %v504, %v505
    %v507 = vrot.slane %v506, 1
    %v508 = vadd.f32 %v506, %v507
    %v509 = vmul.f32 %v508, 0.125
    %v510 = vsub.f32 %v496, %v509
    %v511 = vsub.f32 %v499, %v509
    %v512 = vsel %vm204, %v510, 0.0
    %v513 = vsel %vm205, %v511, 0.0
    %v514 = vmul.f32 %v512, %v512
    %v515 = vmul.f32 %v513, %v513
    %v516 = vadd.f32 %v514, %v515
    %v517 = vrot.slane %v516, 4
    %v518 = vadd.f32 %v516, %v517
    %v519 = vrot.slane %v518, 2
    %v520 = vadd.f32 %v518, %v519
    %v521 = vrot.slane %v520, 1
    %v522 = vadd.f32 %v520, %v521
    %v523 = vmul.f32 %v522, 0.125
    %v524 = vadd.f32 %v523, 1e-05
    %v525 = vrsqrt.pop %v524
    %v526 = vmul.f32 %v410, %v525
    %v528 = vlaneseq
    %v529 = vshrl.u32 %v528, 7
    %v530 = vsub.s32 0, %v529
    %v531 = vrot.slane %v526, %v530
    %v533 = vmul.f32 %v510, %v531
    %v534 = vmul.f32 %v511, %v531
    %v536 = vlaneseq
    %v537 = vshrl.u32 %v536, 7
    %v538 = vsub.s32 0, %v537
    %v539 = vrot.slane %v411, %v538
    %v541 = vadd.f32 %v533, %v539
    %v542 = vadd.f32 %v534, %v539
    %v543 = vmax.f32 %v541, 0.0
    %v544 = vmax.f32 %v542, 0.0
    %v545 = vsel %vm204, %v543, 0.0
    %v546 = vsel %vm205, %v544, 0.0
    %547 = vst [vmem:[%s10] sm:$0xff] %v545
    %548 = vst [vmem:[%s10 + $0x8] sm:$0xff] %v546
    // Predicated region
    $region54: #{fwd.1} parent=1 // pred_check
      _
    $region55: #{fwd.1} parent=1 // pred_check_branch
      %550 = sbr.rel (0) target = $region57
    $region56: #{fwd.1} parent=1 // pred_region
      _
    $region57: #{fwd.1} parent=1 // pred_fallthru
      _
    // Predicated region
    $region58: #{fwd.1} parent=1 // pred_check
      _
    $region59: #{fwd.1} parent=1 // pred_check_branch
      %552 = sbr.rel (0) target = $region61
    $region60: #{fwd.1} parent=1 // pred_region
      _
    $region61: #{fwd.1} parent=1 // pred_fallthru
      _
    %553 = vsyncpa [#allocation3], 1
    %554 = vsyncpa [#allocation5], 1

</llo_original>
